<compile_context>
chip_gen: v5e
topology: v5e:2x2
jax: 0.10.0
libtpu: 0.0.40
codegen_flags: <defaults>
</compile_context>

<pallas_src>
import jax
import jax.numpy as jnp
from jax.experimental import pallas as pl
from jax.experimental.pallas import tpu as pltpu

_LANE = 128
_SUBLANE = 8


def _round_up(n, m):
    return ((n + m - 1) // m) * m


def mlp_kernel(x_ref, w1_ref, b1_ref, w2_ref, b2_ref, w3_ref, b3_ref, o_ref):
    """Fused forward for one batch tile: relu(x@W1+b1) -> relu(.@W2+b2) -> sigmoid(.@W3+b3)."""
    x = x_ref[...]

    h1 = jnp.dot(x, w1_ref[...], preferred_element_type=jnp.float32) + b1_ref[...]
    h1 = jnp.maximum(h1, 0.0)

    h2 = jnp.dot(h1, w2_ref[...], preferred_element_type=jnp.float32) + b2_ref[...]
    h2 = jnp.maximum(h2, 0.0)

    logits = jnp.dot(h2, w3_ref[...], preferred_element_type=jnp.float32) + b3_ref[...]
    o_ref[...] = jax.nn.sigmoid(logits).astype(o_ref.dtype)


def domain_shift_nn_forward(x, params, *, max_block_b=128):
    """Run the fused MLP kernel. x: (B, input_dim) f32. Returns (B, output_dim) f32."""
    w1, b1, w2, b2, w3, b3 = params
    B, input_dim = x.shape
    hidden_dim = w1.shape[1]
    out_dim = w3.shape[1]

    # --- Lane-dense padding of the feature dims (zero-filled => exact results). ---
    hid_p = _round_up(hidden_dim, _LANE)
    out_p = _round_up(out_dim, _LANE)

    w1p = jnp.zeros((input_dim, hid_p), jnp.float32).at[:, :hidden_dim].set(w1)
    b1p = jnp.zeros((1, hid_p), jnp.float32).at[:, :hidden_dim].set(b1)
    w2p = jnp.zeros((hid_p, hid_p), jnp.float32).at[:hidden_dim, :hidden_dim].set(w2)
    b2p = jnp.zeros((1, hid_p), jnp.float32).at[:, :hidden_dim].set(b2)
    w3p = jnp.zeros((hid_p, out_p), jnp.float32).at[:hidden_dim, :out_dim].set(w3)
    b3p = jnp.zeros((1, out_p), jnp.float32).at[:, :out_dim].set(b3)

    # --- Batch tiling: multiple-of-8 sublane tile, capped; pad B up to a tile multiple. ---
    tb = min(max_block_b, _round_up(B, _SUBLANE))
    b_p = _round_up(B, tb)
    xp = jnp.zeros((b_p, input_dim), jnp.float32).at[:B].set(x)

    grid = (pl.cdiv(b_p, tb),)

    # Weights/biases: constant index_map -> VMEM-resident across all grid steps.
    resident = lambda shape: pl.BlockSpec(shape, lambda i: (0, 0))

    out_padded = pl.pallas_call(
        mlp_kernel,
        out_shape=jax.ShapeDtypeStruct((b_p, out_p), jnp.float32),
        grid=grid,
        in_specs=[
            pl.BlockSpec((tb, input_dim), lambda i: (i, 0)),   # x: streamed per tile
            resident((input_dim, hid_p)),                      # W1
            resident((1, hid_p)),                              # b1
            resident((hid_p, hid_p)),                          # W2
            resident((1, hid_p)),                              # b2
            resident((hid_p, out_p)),                          # W3
            resident((1, out_p)),                              # b3
        ],
        out_specs=pl.BlockSpec((tb, out_p), lambda i: (i, 0)),
        compiler_params=pltpu.CompilerParams(
            dimension_semantics=("parallel",),
        ),
    )(xp, w1p, b1p, w2p, b2p, w3p, b3p)

    # Strip batch + lane padding.
    return out_padded[:B, :out_dim]


def init_params(key, input_dim, hidden_dim, output_dim):
    """Kaiming-normal (fan_in, relu gain) weights + 0.01 biases, matching
    torch.nn.init.kaiming_normal_(nonlinearity='relu') / bias.data.fill_(0.01)."""
    k1, k2, k3 = jax.random.split(key, 3)

    def kaiming(k, fan_in, fan_out):
        std = jnp.sqrt(2.0 / fan_in)
        # Stored as (in, out) == transpose of torch's (out, in) layout.
        return jax.random.normal(k, (fan_in, fan_out), dtype=jnp.float32) * std

    w1 = kaiming(k1, input_dim, hidden_dim)
    b1 = jnp.full((1, hidden_dim), 0.01, dtype=jnp.float32)
    w2 = kaiming(k2, hidden_dim, hidden_dim)
    b2 = jnp.full((1, hidden_dim), 0.01, dtype=jnp.float32)
    w3 = kaiming(k3, hidden_dim, output_dim)
    b3 = jnp.full((1, output_dim), 0.01, dtype=jnp.float32)
    return (w1, b1, w2, b2, w3, b3)


def reference_forward(x, params):
    """Pure-JAX reference for correctness check."""
    w1, b1, w2, b2, w3, b3 = params
    h1 = jnp.maximum(x @ w1 + b1, 0.0)
    h2 = jnp.maximum(h1 @ w2 + b2, 0.0)
    return jax.nn.sigmoid(h2 @ w3 + b3)


if __name__ == "__main__":
    # input_dim = state + domain-shift value; small synthetic shapes.
    B, input_dim, hidden_dim, output_dim = 2, 8, 32, 1

    key = jax.random.PRNGKey(0)
    k_params, k_x = jax.random.split(key)

    params = init_params(k_params, input_dim, hidden_dim, output_dim)
    x = jax.random.normal(k_x, (B, input_dim), dtype=jnp.float32)

    out = domain_shift_nn_forward(x, params)
    out = jax.block_until_ready(out)

    ref = reference_forward(x, params)
    assert out.shape == (B, output_dim)
    assert jnp.allclose(out, ref, atol=1e-5, rtol=1e-5)

    print("KERNEL_OK")
</pallas_src>

<mosaic_0001>
module attributes {stable_mosaic.version = 11 : i64} {
  func.func @mlp_kernel(%arg0: i32, %arg1: memref<8x8xf32, #tpu.memory_space<vmem>>, %arg2: memref<8x128xf32, #tpu.memory_space<vmem>>, %arg3: memref<1x128xf32, #tpu.memory_space<vmem>>, %arg4: memref<128x128xf32, #tpu.memory_space<vmem>>, %arg5: memref<1x128xf32, #tpu.memory_space<vmem>>, %arg6: memref<128x128xf32, #tpu.memory_space<vmem>>, %arg7: memref<1x128xf32, #tpu.memory_space<vmem>>, %arg8: memref<8x128xf32, #tpu.memory_space<vmem>>) attributes {dimension_semantics = [#tpu.dimension_semantics<parallel>], iteration_bounds = array<i64: 1>, scalar_prefetch = 0 : i64, scratch_operands = 0 : i64, tpu.core_type = #tpu.core_type<tc>, window_params = [{transform_indices = @transform_0, window_bounds = array<i64: 8, 8>}, {pipeline_mode = #tpu.pipeline_mode<synchronous>, transform_indices = @transform_1, window_bounds = array<i64: 8, 128>}, {pipeline_mode = #tpu.pipeline_mode<synchronous>, transform_indices = @transform_2, window_bounds = array<i64: 1, 128>}, {pipeline_mode = #tpu.pipeline_mode<synchronous>, transform_indices = @transform_3, window_bounds = array<i64: 128, 128>}, {pipeline_mode = #tpu.pipeline_mode<synchronous>, transform_indices = @transform_4, window_bounds = array<i64: 1, 128>}, {pipeline_mode = #tpu.pipeline_mode<synchronous>, transform_indices = @transform_5, window_bounds = array<i64: 128, 128>}, {pipeline_mode = #tpu.pipeline_mode<synchronous>, transform_indices = @transform_6, window_bounds = array<i64: 1, 128>}, {transform_indices = @transform_7, window_bounds = array<i64: 8, 128>}]} {
    %c0 = arith.constant 0 : index
    %c0_0 = arith.constant 0 : index
    %0 = vector.load %arg1[%c0, %c0_0] : memref<8x8xf32, #tpu.memory_space<vmem>>, vector<8x8xf32>
    %c0_1 = arith.constant 0 : index
    %c0_2 = arith.constant 0 : index
    %1 = vector.load %arg2[%c0_1, %c0_2] : memref<8x128xf32, #tpu.memory_space<vmem>>, vector<8x128xf32>
    %cst = arith.constant dense<0.000000e+00> : vector<8x128xf32>
    %2 = tpu.matmul %0, %1, %cst {dimension_numbers = #tpu.dot_dimension_numbers<[1], [0], [0], [1], [0, 0, 1, 1], [], []>} : vector<8x8xf32>, vector<8x128xf32>, vector<8x128xf32> -> vector<8x128xf32>
    %c0_3 = arith.constant 0 : index
    %c0_4 = arith.constant 0 : index
    %3 = vector.load %arg3[%c0_3, %c0_4] : memref<1x128xf32, #tpu.memory_space<vmem>>, vector<1x128xf32>
    %4 = vector.broadcast %3 : vector<1x128xf32> to vector<8x128xf32>
    %5 = arith.addf %2, %4 : vector<8x128xf32>
    %cst_5 = arith.constant 0.000000e+00 : f32
    %6 = vector.broadcast %cst_5 : f32 to vector<8x128xf32>
    %7 = arith.maximumf %5, %6 : vector<8x128xf32>
    %c0_6 = arith.constant 0 : index
    %c0_7 = arith.constant 0 : index
    %8 = vector.load %arg4[%c0_6, %c0_7] : memref<128x128xf32, #tpu.memory_space<vmem>>, vector<128x128xf32>
    %cst_8 = arith.constant dense<0.000000e+00> : vector<8x128xf32>
    %9 = tpu.matmul %7, %8, %cst_8 {dimension_numbers = #tpu.dot_dimension_numbers<[1], [0], [0], [1], [0, 0, 1, 1], [], []>} : vector<8x128xf32>, vector<128x128xf32>, vector<8x128xf32> -> vector<8x128xf32>
    %c0_9 = arith.constant 0 : index
    %c0_10 = arith.constant 0 : index
    %10 = vector.load %arg5[%c0_9, %c0_10] : memref<1x128xf32, #tpu.memory_space<vmem>>, vector<1x128xf32>
    %11 = vector.broadcast %10 : vector<1x128xf32> to vector<8x128xf32>
    %12 = arith.addf %9, %11 : vector<8x128xf32>
    %cst_11 = arith.constant 0.000000e+00 : f32
    %13 = vector.broadcast %cst_11 : f32 to vector<8x128xf32>
    %14 = arith.maximumf %12, %13 : vector<8x128xf32>
    %c0_12 = arith.constant 0 : index
    %c0_13 = arith.constant 0 : index
    %15 = vector.load %arg6[%c0_12, %c0_13] : memref<128x128xf32, #tpu.memory_space<vmem>>, vector<128x128xf32>
    %cst_14 = arith.constant dense<0.000000e+00> : vector<8x128xf32>
    %16 = tpu.matmul %14, %15, %cst_14 {dimension_numbers = #tpu.dot_dimension_numbers<[1], [0], [0], [1], [0, 0, 1, 1], [], []>} : vector<8x128xf32>, vector<128x128xf32>, vector<8x128xf32> -> vector<8x128xf32>
    %c0_15 = arith.constant 0 : index
    %c0_16 = arith.constant 0 : index
    %17 = vector.load %arg7[%c0_15, %c0_16] : memref<1x128xf32, #tpu.memory_space<vmem>>, vector<1x128xf32>
    %18 = vector.broadcast %17 : vector<1x128xf32> to vector<8x128xf32>
    %19 = arith.addf %16, %18 : vector<8x128xf32>
    %20 = arith.negf %19 : vector<8x128xf32>
    %21 = math.exp %20 : vector<8x128xf32>
    %cst_17 = arith.constant 1.000000e+00 : f32
    %22 = vector.broadcast %cst_17 : f32 to vector<8x128xf32>
    %23 = arith.addf %22, %21 : vector<8x128xf32>
    %24 = arith.divf %22, %23 : vector<8x128xf32>
    %c0_18 = arith.constant 0 : index
    %c0_19 = arith.constant 0 : index
    %25 = vector.load %arg8[%c0_18, %c0_19] : memref<8x128xf32, #tpu.memory_space<vmem>>, vector<8x128xf32>
    tpu.vector_store %arg8[%c0_18, %c0_19], %24 {strides = array<i32>} : memref<8x128xf32, #tpu.memory_space<vmem>>, vector<8x128xf32>,
    return
  }
  func.func @transform_0(%arg0: i32) -> (i32, i32) {
    %c0_i32 = arith.constant 0 : i32
    %c0_i32_0 = arith.constant 0 : i32
    return %arg0, %c0_i32 : i32, i32
  }
  func.func @transform_1(%arg0: i32) -> (i32, i32) {
    %c0_i32 = arith.constant 0 : i32
    %c0_i32_0 = arith.constant 0 : i32
    %c0_i32_1 = arith.constant 0 : i32
    return %c0_i32, %c0_i32_0 : i32, i32
  }
  func.func @transform_2(%arg0: i32) -> (i32, i32) {
    %c0_i32 = arith.constant 0 : i32
    %c0_i32_0 = arith.constant 0 : i32
    %c0_i32_1 = arith.constant 0 : i32
    return %c0_i32, %c0_i32_0 : i32, i32
  }
  func.func @transform_3(%arg0: i32) -> (i32, i32) {
    %c0_i32 = arith.constant 0 : i32
    %c0_i32_0 = arith.constant 0 : i32
    %c0_i32_1 = arith.constant 0 : i32
    return %c0_i32, %c0_i32_0 : i32, i32
  }
  func.func @transform_4(%arg0: i32) -> (i32, i32) {
    %c0_i32 = arith.constant 0 : i32
    %c0_i32_0 = arith.constant 0 : i32
    %c0_i32_1 = arith.constant 0 : i32
    return %c0_i32, %c0_i32_0 : i32, i32
  }
  func.func @transform_5(%arg0: i32) -> (i32, i32) {
    %c0_i32 = arith.constant 0 : i32
    %c0_i32_0 = arith.constant 0 : i32
    %c0_i32_1 = arith.constant 0 : i32
    return %c0_i32, %c0_i32_0 : i32, i32
  }
  func.func @transform_6(%arg0: i32) -> (i32, i32) {
    %c0_i32 = arith.constant 0 : i32
    %c0_i32_0 = arith.constant 0 : i32
    %c0_i32_1 = arith.constant 0 : i32
    return %c0_i32, %c0_i32_0 : i32, i32
  }
  func.func @transform_7(%arg0: i32) -> (i32, i32) {
    %c0_i32 = arith.constant 0 : i32
    %c0_i32_0 = arith.constant 0 : i32
    return %arg0, %c0_i32 : i32, i32
  }
}

</mosaic_0001>

<llo_original>
// kernel: tpu_custom_call.1
$region0: #{tpu_custom_call.1}
  #allocation0 [shape = 'u32[]', space=smem, size = 0x4, offset = 0x4, fixed_abs, tag = 'smem constant byte address 0x4 - core index']
  #allocation1 [shape = 'u32[72,128]{1,0:T(1,128)}', space=vmem, size = 0x9000, scoped, tag = 'internal scratch']
  %s0 = inlined_call_operand.hbm [shape: f32[8,8], index: 0, kind: input, shape index: {}]
  %s1 = inlined_call_operand.hbm [shape: f32[8,128], index: 1, kind: input, shape index: {}]
  %s2 = inlined_call_operand.vmem [shape: f32[1,128], index: 2, kind: input, shape index: {}]
  %s3 = inlined_call_operand.hbm [shape: f32[128,128], index: 3, kind: input, shape index: {}]
  %s4 = inlined_call_operand.vmem [shape: f32[1,128], index: 4, kind: input, shape index: {}]
  %s5 = inlined_call_operand.hbm [shape: f32[128,128], index: 5, kind: input, shape index: {}]
  %s6 = inlined_call_operand.vmem [shape: f32[1,128], index: 6, kind: input, shape index: {}]
  %s7 = inlined_call_operand.hbm [shape: f32[8,128], index: 7, kind: output, shape index: {}]
  %s8 = sld [smem:[#allocation0]]
  $region54: #{tpu_custom_call.1} parent=0
    _
  %s10 = ssub.s32 1, %s8
  %s11 = scalar_select 0, %s10, %s8
  $region1: #{tpu_custom_call.1} parent=0
    #allocation2 [shape = 'u8[4096]{0}', space=vmem, size = 0x1000, scoped, tag = 'input window, operand 0, single buffered']
    #allocation3 [shape = 's32[1]{0}', space=sflag, size = 0x4, scoped, tag = 'scoped memory for tpu_custom_call.1']
    #allocation4 [shape = 's32[1]{0}', space=sflag, size = 0x4, scoped, tag = 'scoped memory for tpu_custom_call.1']
    #allocation5 [shape = 'u8[4096]{0}', space=vmem, size = 0x1000, scoped, tag = 'input window, operand 1, single buffered']
    #allocation6 [shape = 's32[1]{0}', space=sflag, size = 0x4, scoped, tag = 'scoped memory for tpu_custom_call.1']
    #allocation7 [shape = 'u8[65536]{0}', space=vmem, size = 0x10000, scoped, tag = 'input window, operand 3, single buffered']
    #allocation8 [shape = 'u8[65536]{0}', space=vmem, size = 0x10000, scoped, tag = 'input window, operand 5, single buffered']
    #allocation9 [shape = 's32[1]{0}', space=sflag, size = 0x4, scoped, tag = 'scoped memory for tpu_custom_call.1']
    #allocation10 [shape = 'u8[4096]{0}', space=vmem, size = 0x1000, scoped, tag = 'output window, operand 0, single buffered']
    %12 = vsyncpa [#allocation3], 0
    %13 = vsyncpa [#allocation6], 0
    %14 = vsyncpa [#allocation9], 0
    %15 = vsyncpa [#allocation4], 0
    // Predicated region
    $region2: #{tpu_custom_call.1} parent=1 // pred_check
      _
    $region3: #{tpu_custom_call.1} parent=1 // pred_check_branch
      %17 = sbr.rel (0) target = $region5
    $region4: #{tpu_custom_call.1} parent=1 // pred_region
      %19 = vsyncadd [#allocation3], 0
      %s21 = sshll.u32 %s0, 4
      %s22 = int_to_ptr.hbm [resolvable:$true] %s21
      %s23 = sshll.u32 [#allocation2], 4
      %s24 = int_to_ptr.vmem [resolvable:$true] %s23
      %26 = dma.hbm_to_vmem [thread:$0]  %s22, 128, %s24, [#allocation3]
    $region5: #{tpu_custom_call.1} parent=1 // pred_fallthru
      _
    // Predicated region
    $region6: #{tpu_custom_call.1} parent=1 // pred_check
      _
    $region7: #{tpu_custom_call.1} parent=1 // pred_check_branch
      %28 = sbr.rel (0) target = $region9
    $region8: #{tpu_custom_call.1} parent=1 // pred_region
      %30 = vsyncadd [#allocation6], 0
      %s32 = sshll.u32 %s1, 4
      %s33 = int_to_ptr.hbm [resolvable:$true] %s32
      %s34 = sshll.u32 [#allocation5], 4
      %s35 = int_to_ptr.vmem [resolvable:$true] %s34
      %37 = dma.hbm_to_vmem [thread:$0]  %s33, 128, %s35, [#allocation6]
    $region9: #{tpu_custom_call.1} parent=1 // pred_fallthru
      _
    // Predicated region
    $region10: #{tpu_custom_call.1} parent=1 // pred_check
      _
    $region11: #{tpu_custom_call.1} parent=1 // pred_check_branch
      %39 = sbr.rel (0) target = $region13
    $region12: #{tpu_custom_call.1} parent=1 // pred_region
      _
    $region13: #{tpu_custom_call.1} parent=1 // pred_fallthru
      _
    // Predicated region
    $region14: #{tpu_custom_call.1} parent=1 // pred_check
      _
    $region15: #{tpu_custom_call.1} parent=1 // pred_check_branch
      %41 = sbr.rel (0) target = $region17
    $region16: #{tpu_custom_call.1} parent=1 // pred_region
      %43 = vsyncadd [#allocation6], 0
      %s44 = sshll.u32 %s3, 4
      %s45 = int_to_ptr.hbm [resolvable:$true] %s44
      %s46 = sshll.u32 [#allocation7], 4
      %s47 = int_to_ptr.vmem [resolvable:$true] %s46
      %52 = dma.hbm_to_vmem [thread:$0]  %s45, 2048, %s47, [#allocation6], 128, 128, 8
    $region17: #{tpu_custom_call.1} parent=1 // pred_fallthru
      _
    // Predicated region
    $region18: #{tpu_custom_call.1} parent=1 // pred_check
      _
    $region19: #{tpu_custom_call.1} parent=1 // pred_check_branch
      %54 = sbr.rel (0) target = $region21
    $region20: #{tpu_custom_call.1} parent=1 // pred_region
      _
    $region21: #{tpu_custom_call.1} parent=1 // pred_fallthru
      _
    // Predicated region
    $region22: #{tpu_custom_call.1} parent=1 // pred_check
      _
    $region23: #{tpu_custom_call.1} parent=1 // pred_check_branch
      %56 = sbr.rel (0) target = $region25
    $region24: #{tpu_custom_call.1} parent=1 // pred_region
      %58 = vsyncadd [#allocation9], 0
      %s59 = sshll.u32 %s5, 4
      %s60 = int_to_ptr.hbm [resolvable:$true] %s59
      %s61 = sshll.u32 [#allocation8], 4
      %s62 = int_to_ptr.vmem [resolvable:$true] %s61
      %67 = dma.hbm_to_vmem [thread:$0]  %s60, 2048, %s62, [#allocation9], 128, 128, 8
    $region25: #{tpu_custom_call.1} parent=1 // pred_fallthru
      _
    // Predicated region
    $region26: #{tpu_custom_call.1} parent=1 // pred_check
      _
    $region27: #{tpu_custom_call.1} parent=1 // pred_check_branch
      %69 = sbr.rel (0) target = $region29
    $region28: #{tpu_custom_call.1} parent=1 // pred_region
      _
    $region29: #{tpu_custom_call.1} parent=1 // pred_fallthru
      _
    // Predicated region
    $region30: #{tpu_custom_call.1} parent=1 // pred_check
      _
    $region31: #{tpu_custom_call.1} parent=1 // pred_check_branch
      %71 = sbr.rel (0) target = $region33
    $region32: #{tpu_custom_call.1} parent=1 // pred_region
      %73 = dma.done [#allocation3], 128
    $region33: #{tpu_custom_call.1} parent=1 // pred_fallthru
      _
    // Predicated region
    $region34: #{tpu_custom_call.1} parent=1 // pred_check
      _
    $region35: #{tpu_custom_call.1} parent=1 // pred_check_branch
      %75 = sbr.rel (0) target = $region37
    $region36: #{tpu_custom_call.1} parent=1 // pred_region
      %77 = dma.done [#allocation6], 128
    $region37: #{tpu_custom_call.1} parent=1 // pred_fallthru
      _
    // Predicated region
    $region38: #{tpu_custom_call.1} parent=1 // pred_check
      _
    $region39: #{tpu_custom_call.1} parent=1 // pred_check_branch
      %79 = sbr.rel (0) target = $region41
    $region40: #{tpu_custom_call.1} parent=1 // pred_region
      %81 = dma.done [#allocation6], 2048
    $region41: #{tpu_custom_call.1} parent=1 // pred_fallthru
      _
    // Predicated region
    $region42: #{tpu_custom_call.1} parent=1 // pred_check
      _
    $region43: #{tpu_custom_call.1} parent=1 // pred_check_branch
      %83 = sbr.rel (0) target = $region45
    $region44: #{tpu_custom_call.1} parent=1 // pred_region
      %85 = dma.done [#allocation9], 2048
    $region45: #{tpu_custom_call.1} parent=1 // pred_fallthru
      _
    %v86 = vld [vmem:[#allocation2] sm:$0xff]
    %v87 = vld [vmem:[#allocation5] sm:$0xff]
    %v88 = vld [vmem:[%s2] sm:$0x1]
    %v90 = vperm.slane %v88, 0
    %vm92 = vcmask 64512
    %v94 = vsel %vm92, %v86, 0
    %96 = vmatpush.msra.mxu0 0.0
    %97 = vmatpush.msra.mxu0 0.0
    %98 = vmatpush.msra.mxu0 0.0
    %99 = vmatpush.msra.mxu0 0.0
    %100 = vmatpush.msra.mxu0 0.0
    %101 = vmatpush.msra.mxu0 0.0
    %102 = vmatpush.msra.mxu0 0.0
    %103 = vmatpush.msra.mxu0 0.0
    %104 = vmatpush.msra.mxu0 0.0
    %105 = vmatpush.msra.mxu0 0.0
    %106 = vmatpush.msra.mxu0 0.0
    %107 = vmatpush.msra.mxu0 0.0
    %108 = vmatpush.msra.mxu0 0.0
    %109 = vmatpush.msra.mxu0 0.0
    %110 = vmatpush.msra.mxu0 0.0
    %111 = vmatpush.msra.mxu0 %v87
    %112 = vmatmul.f32.gmra.mxu0 %v94
    %v113 = vpop.f32.mrf.mxu0
    %v114 = vadd.f32 %v90, %v113
    %115 = vdwg.mxu0
    %v116 = vmax.f32 %v114, 0.0
    %v117 = vld [vmem:[#allocation7] sm:$0xff]
    %v118 = vld [vmem:[#allocation7 + $0x8] sm:$0xff]
    %v119 = vld [vmem:[#allocation7 + $0x10] sm:$0xff]
    %v120 = vld [vmem:[#allocation7 + $0x18] sm:$0xff]
    %v121 = vld [vmem:[#allocation7 + $0x20] sm:$0xff]
    %v122 = vld [vmem:[#allocation7 + $0x28] sm:$0xff]
    %v123 = vld [vmem:[#allocation7 + $0x30] sm:$0xff]
    %v124 = vld [vmem:[#allocation7 + $0x38] sm:$0xff]
    %v125 = vld [vmem:[#allocation7 + $0x40] sm:$0xff]
    %v126 = vld [vmem:[#allocation7 + $0x48] sm:$0xff]
    %v127 = vld [vmem:[#allocation7 + $0x50] sm:$0xff]
    %v128 = vld [vmem:[#allocation7 + $0x58] sm:$0xff]
    %v129 = vld [vmem:[#allocation7 + $0x60] sm:$0xff]
    %v130 = vld [vmem:[#allocation7 + $0x68] sm:$0xff]
    %v131 = vld [vmem:[#allocation7 + $0x70] sm:$0xff]
    %v132 = vld [vmem:[#allocation7 + $0x78] sm:$0xff]
    %v133 = vld [vmem:[%s4] sm:$0x1]
    %v135 = vperm.slane %v133, 0
    %137 = vmatpush.msra.mxu0 %v132
    %138 = vmatpush.msra.mxu0 %v131
    %139 = vmatpush.msra.mxu0 %v130
    %140 = vmatpush.msra.mxu0 %v129
    %141 = vmatpush.msra.mxu0 %v128
    %142 = vmatpush.msra.mxu0 %v127
    %143 = vmatpush.msra.mxu0 %v126
    %144 = vmatpush.msra.mxu0 %v125
    %145 = vmatpush.msra.mxu0 %v124
    %146 = vmatpush.msra.mxu0 %v123
    %147 = vmatpush.msra.mxu0 %v122
    %148 = vmatpush.msra.mxu0 %v121
    %149 = vmatpush.msra.mxu0 %v120
    %150 = vmatpush.msra.mxu0 %v119
    %151 = vmatpush.msra.mxu0 %v118
    %152 = vmatpush.msra.mxu0 %v117
    %153 = vmatmul.f32.gmra.mxu0 %v116
    %v154 = vpop.f32.mrf.mxu0
    %v155 = vadd.f32 %v135, %v154
    %156 = vdwg.mxu0
    %v157 = vmax.f32 %v155, 0.0
    %v158 = vld [vmem:[#allocation8] sm:$0xff]
    %v159 = vld [vmem:[#allocation8 + $0x8] sm:$0xff]
    %v160 = vld [vmem:[#allocation8 + $0x10] sm:$0xff]
    %v161 = vld [vmem:[#allocation8 + $0x18] sm:$0xff]
    %v162 = vld [vmem:[#allocation8 + $0x20] sm:$0xff]
    %v163 = vld [vmem:[#allocation8 + $0x28] sm:$0xff]
    %v164 = vld [vmem:[#allocation8 + $0x30] sm:$0xff]
    %v165 = vld [vmem:[#allocation8 + $0x38] sm:$0xff]
    %v166 = vld [vmem:[#allocation8 + $0x40] sm:$0xff]
    %v167 = vld [vmem:[#allocation8 + $0x48] sm:$0xff]
    %v168 = vld [vmem:[#allocation8 + $0x50] sm:$0xff]
    %v169 = vld [vmem:[#allocation8 + $0x58] sm:$0xff]
    %v170 = vld [vmem:[#allocation8 + $0x60] sm:$0xff]
    %v171 = vld [vmem:[#allocation8 + $0x68] sm:$0xff]
    %v172 = vld [vmem:[#allocation8 + $0x70] sm:$0xff]
    %v173 = vld [vmem:[#allocation8 + $0x78] sm:$0xff]
    %v174 = vld [vmem:[%s6] sm:$0x1]
    %v176 = vperm.slane %v174, 0
    %178 = vmatpush.msra.mxu0 %v173
    %179 = vmatpush.msra.mxu0 %v172
    %180 = vmatpush.msra.mxu0 %v171
    %181 = vmatpush.msra.mxu0 %v170
    %182 = vmatpush.msra.mxu0 %v169
    %183 = vmatpush.msra.mxu0 %v168
    %184 = vmatpush.msra.mxu0 %v167
    %185 = vmatpush.msra.mxu0 %v166
    %186 = vmatpush.msra.mxu0 %v165
    %187 = vmatpush.msra.mxu0 %v164
    %188 = vmatpush.msra.mxu0 %v163
    %189 = vmatpush.msra.mxu0 %v162
    %190 = vmatpush.msra.mxu0 %v161
    %191 = vmatpush.msra.mxu0 %v160
    %192 = vmatpush.msra.mxu0 %v159
    %193 = vmatpush.msra.mxu0 %v158
    %194 = vmatmul.f32.gmra.mxu0 %v157
    %v195 = vpop.f32.mrf.mxu0
    %v196 = vadd.f32 %v176, %v195
    %197 = vdwg.mxu0
    %v198 = vxor.u32 %v196, 2147483648
    %v199 = vmul.f32 %v198, 1.442695
    %v200 = vpow.pop %v199
    %v201 = vadd.f32 %v200, 1.0
    %v202 = vrcp.pop %v201
    %v203 = vmul.f32 %v201, %v202
    %v204 = vsub.f32 1.0, %v203
    %v205 = vmul.f32 %v202, %v204
    %v206 = vadd.f32 %v202, %v205
    %vm207 = vweird.f32 %v201
    %vm208 = vweird.f32 %v202
    %vm209 = vmor %vm207, %vm208
    %v210 = vsel %vm209, %v202, %v206
    %v211 = vand.u32 2147483647, %v201
    %vm212 = vcmp.eq.f32.partialorder %v211, 8.507059e+37
    %v213 = vand.u32 %v201, 2147483648
    %v214 = vor.u32 1.1754944e-38, %v213
    %v215 = vsel %vm212, %v214, %v210
    %v216 = vmul.f32 1.0, %v215
    %217 = vst [vmem:[#allocation10] sm:$0xff] %v216
    // Predicated region
    $region46: #{tpu_custom_call.1} parent=1 // pred_check
      _
    $region47: #{tpu_custom_call.1} parent=1 // pred_check_branch
      %219 = sbr.rel (0) target = $region49
    $region48: #{tpu_custom_call.1} parent=1 // pred_region
      %221 = vsyncadd [#allocation4], 0
      %s223 = sshll.u32 [#allocation10], 4
      %s224 = int_to_ptr.vmem [resolvable:$true] %s223
      %s225 = sshll.u32 %s7, 4
      %s226 = int_to_ptr.hbm [resolvable:$true] %s225
      %228 = dma.vmem_to_hbm [thread:$0]  %s224, 128, %s226, [#allocation4]
    $region49: #{tpu_custom_call.1} parent=1 // pred_fallthru
      _
    // Predicated region
    $region50: #{tpu_custom_call.1} parent=1 // pred_check
      _
    $region51: #{tpu_custom_call.1} parent=1 // pred_check_branch
      %230 = sbr.rel (0) target = $region53
    $region52: #{tpu_custom_call.1} parent=1 // pred_region
      %232 = dma.done [#allocation4], 128
    $region53: #{tpu_custom_call.1} parent=1 // pred_fallthru
      _
    %233 = vsyncpa [#allocation3], 1
    %234 = vsyncpa [#allocation6], 1
    %235 = vsyncpa [#allocation9], 1
    %236 = vsyncpa [#allocation4], 1

</llo_original>
